<compile_context>
chip_gen: v6e
topology: v6e:2x2x1
jax: 0.10.0
libtpu: 0.0.40
codegen_flags: <defaults>
</compile_context>

<pallas_src>
import functools

import jax
import jax.numpy as jnp
from jax.experimental import pallas as pl
from jax.experimental.pallas import tpu as pltpu

BN_EPS = 1e-3


# ----------------------------- fused Pallas kernel -----------------------------

def _sep_conv_kernel(x_ref, dw_ref, pw_ref, scale_ref, shift_ref, o_ref,
                     *, H, Wp, apply_swish):
    """Fused depthwise3x3 -> pointwise 1x1 -> scale/shift -> (swish).

    x_ref    : (1, Cin, Lp)   zero-padded input, flattened spatial, Lp = (H+3)*(W+2)
    dw_ref   : (Cin, 9)       depthwise taps, row-major over (dy, dx)
    pw_ref   : (Cout, Cin)    pointwise weight (torch (Cout,Cin,1,1) squeezed)
    scale_ref: (Cout, 1)      fused BN scale (ones if no norm)
    shift_ref: (Cout, 1)      fused BN shift + folded conv bias
    o_ref    : (1, Cout, Lout), Lout = H*Wp (right-pad columns hold garbage; the
                               wrapper slices them off)
    """
    Lout = H * Wp
    x = x_ref[0]                                      # (Cin, Lp), loaded once
    # depthwise 3x3: each tap is a static lane-shift of the flat padded spatial axis
    acc = x[:, 0:Lout] * dw_ref[:, 0:1]
    for dy in range(3):
        for dx in range(3):
            if dy == 0 and dx == 0:
                continue
            k = dy * Wp + dx
            tap = 3 * dy + dx
            acc = acc + x[:, k:k + Lout] * dw_ref[:, tap:tap + 1]
    # pointwise 1x1 conv as a transposed (lane-dense) matmul on the MXU
    y = jnp.dot(pw_ref[...], acc, preferred_element_type=jnp.float32)   # (Cout, Lout)
    y = y * scale_ref[...] + shift_ref[...]
    if apply_swish:
        # swish: x * sigmoid(x); exp and the reciprocal both run on the EUP slot
        y = y * pl.reciprocal(1.0 + jnp.exp(-y), approx=True)
    o_ref[0] = y


# ----------------------------- wrapper -----------------------------

def separable_conv_block(x, params, *, norm=False, activation=False, bn_eps=BN_EPS):
    """SeparableConvBlock forward.  x: (N, Cin, H, W) float32 (NCHW, like PyTorch)."""
    N, Cin, H, W = x.shape
    pw = params['pw']
    Cout = pw.shape[0]

    bias = params['bias']
    if norm:
        scale = params['gamma'] / jnp.sqrt(params['var'] + bn_eps)
        shift = params['beta'] + (bias - params['mean']) * scale
    else:
        scale = jnp.ones((Cout,), jnp.float32)
        shift = bias

    # Static "same" padding for k=3, s=1 is always (1,1)/(1,1).  One extra bottom row
    # gives the flat-window slack needed by the in-kernel lane shifts (max shift 2*Wp+2).
    Wp, Hp = W + 2, H + 3
    Lp, Lout = Hp * Wp, H * Wp
    xf = jnp.pad(x, ((0, 0), (0, 0), (1, 2), (1, 1))).reshape(N, Cin, Lp)

    kernel = functools.partial(_sep_conv_kernel, H=H, Wp=Wp, apply_swish=activation)
    yf = pl.pallas_call(
        kernel,
        out_shape=jax.ShapeDtypeStruct((N, Cout, Lout), jnp.float32),
        grid_spec=pltpu.PrefetchScalarGridSpec(
            num_scalar_prefetch=0,
            grid=(N,),
            in_specs=[
                pl.BlockSpec((1, Cin, Lp), lambda n: (n, 0, 0)),
                pl.BlockSpec((Cin, 9), lambda n: (0, 0)),
                pl.BlockSpec((Cout, Cin), lambda n: (0, 0)),
                pl.BlockSpec((Cout, 1), lambda n: (0, 0)),
                pl.BlockSpec((Cout, 1), lambda n: (0, 0)),
            ],
            out_specs=pl.BlockSpec((1, Cout, Lout), lambda n: (n, 0, 0)),
        ),
        compiler_params=pltpu.CompilerParams(
            dimension_semantics=("parallel",)),
    )(xf, params['dw'].reshape(Cin, 9), pw,
      scale.reshape(Cout, 1), shift.reshape(Cout, 1))

    # un-flatten and drop the right-pad garbage columns -> NCHW output
    return yf.reshape(N, Cout, H, Wp)[:, :, :, :W]


# ----------------------------- pure-JAX reference -----------------------------

def separable_conv_block_ref(x, params, *, norm=False, activation=False, bn_eps=BN_EPS):
    N, Cin, H, W = x.shape
    Cout = params['pw'].shape[0]
    y = jax.lax.conv_general_dilated(
        x, params['dw'].reshape(Cin, 1, 3, 3), window_strides=(1, 1),
        padding=((1, 1), (1, 1)),
        dimension_numbers=('NCHW', 'OIHW', 'NCHW'), feature_group_count=Cin)
    y = jax.lax.conv_general_dilated(
        y, params['pw'].reshape(Cout, Cin, 1, 1), window_strides=(1, 1),
        padding='VALID', dimension_numbers=('NCHW', 'OIHW', 'NCHW'))
    y = y + params['bias'][None, :, None, None]
    if norm:
        inv = 1.0 / jnp.sqrt(params['var'] + bn_eps)
        y = ((y - params['mean'][None, :, None, None])
             * (params['gamma'] * inv)[None, :, None, None]
             + params['beta'][None, :, None, None])
    if activation:
        y = y * jax.nn.sigmoid(y)
    return y


# ----------------------------- params -----------------------------

def init_params(key, cin, cout=None):
    cout = cin if cout is None else cout
    ks = jax.random.split(key, 7)
    return dict(
        dw=0.3 * jax.random.normal(ks[0], (cin, 3, 3), jnp.float32),
        pw=0.3 * jax.random.normal(ks[1], (cout, cin), jnp.float32),
        bias=0.1 * jax.random.normal(ks[2], (cout,), jnp.float32),
        gamma=1.0 + 0.1 * jax.random.normal(ks[3], (cout,), jnp.float32),
        beta=0.1 * jax.random.normal(ks[4], (cout,), jnp.float32),
        mean=0.1 * jax.random.normal(ks[5], (cout,), jnp.float32),
        var=1.0 + 0.1 * jnp.abs(jax.random.normal(ks[6], (cout,), jnp.float32)),
    )


# ----------------------------- main -----------------------------

if __name__ == "__main__":
    key = jax.random.PRNGKey(0)
    kx1, kx2, kp1, kp2 = jax.random.split(key, 4)

    # config 1: module defaults (no norm, no activation), Cout == Cin
    x1 = jax.random.normal(kx1, (2, 16, 16, 16), jnp.float32)   # (N, C, H, W)
    p1 = init_params(kp1, 16)
    out1 = jax.block_until_ready(separable_conv_block(x1, p1, norm=False, activation=False))
    ref1 = separable_conv_block_ref(x1, p1, norm=False, activation=False)

    # config 2: BN + swish, Cout != Cin, non-square spatial (exercises the full fused path)
    x2 = jax.random.normal(kx2, (2, 16, 16, 12), jnp.float32)
    p2 = init_params(kp2, 16, 32)
    out2 = jax.block_until_ready(separable_conv_block(x2, p2, norm=True, activation=True))
    ref2 = separable_conv_block_ref(x2, p2, norm=True, activation=True)

    assert out1.shape == (2, 16, 16, 16), out1.shape
    assert out2.shape == (2, 32, 16, 12), out2.shape
    for o, r in ((out1, ref1), (out2, ref2)):
        assert bool(jnp.all(jnp.isfinite(o)))
        err = float(jnp.max(jnp.abs(o - r)))
        ref_scale = float(jnp.max(jnp.abs(r))) + 1e-3
        assert err <= 2e-2 * ref_scale, f"max abs err {err} vs ref scale {ref_scale}"

    print("KERNEL_OK")
</pallas_src>

<mosaic_0001>
module attributes {stable_mosaic.version = 11 : i64} {
  func.func @_sep_conv_kernel(%arg0: i32, %arg1: memref<1x16x342xf32, #tpu.memory_space<vmem>>, %arg2: memref<16x9xf32, #tpu.memory_space<vmem>>, %arg3: memref<16x16xf32, #tpu.memory_space<vmem>>, %arg4: memref<16x1xf32, #tpu.memory_space<vmem>>, %arg5: memref<16x1xf32, #tpu.memory_space<vmem>>, %arg6: memref<1x16x288xf32, #tpu.memory_space<vmem>>) attributes {dimension_semantics = [#tpu.dimension_semantics<parallel>], iteration_bounds = array<i64: 2>, scalar_prefetch = 0 : i64, scratch_operands = 0 : i64, tpu.core_type = #tpu.core_type<tc>, window_params = [{transform_indices = @transform_0, window_bounds = array<i64: 1, 16, 342>}, {pipeline_mode = #tpu.pipeline_mode<synchronous>, transform_indices = @transform_1, window_bounds = array<i64: 16, 9>}, {pipeline_mode = #tpu.pipeline_mode<synchronous>, transform_indices = @transform_2, window_bounds = array<i64: 16, 16>}, {pipeline_mode = #tpu.pipeline_mode<synchronous>, transform_indices = @transform_3, window_bounds = array<i64: 16, 1>}, {pipeline_mode = #tpu.pipeline_mode<synchronous>, transform_indices = @transform_4, window_bounds = array<i64: 16, 1>}, {transform_indices = @transform_5, window_bounds = array<i64: 1, 16, 288>}]} {
    %c0 = arith.constant 0 : index
    %c0_0 = arith.constant 0 : index
    %c0_1 = arith.constant 0 : index
    %0 = vector.load %arg1[%c0, %c0_0, %c0_1] : memref<1x16x342xf32, #tpu.memory_space<vmem>>, vector<1x16x342xf32>
    %1 = vector.shape_cast %0 : vector<1x16x342xf32> to vector<16x342xf32>
    %2 = vector.extract_strided_slice %1 {offsets = [0, 0], sizes = [16, 288], strides = [1, 1]} : vector<16x342xf32> to vector<16x288xf32>
    %c0_2 = arith.constant 0 : index
    %c0_3 = arith.constant 0 : index
    %3 = vector.load %arg2[%c0_2, %c0_3] : memref<16x9xf32, #tpu.memory_space<vmem>>, vector<16x1xf32>
    %4 = vector.broadcast %3 : vector<16x1xf32> to vector<16x288xf32>
    %5 = arith.mulf %2, %4 : vector<16x288xf32>
    %6 = vector.extract_strided_slice %1 {offsets = [0, 1], sizes = [16, 288], strides = [1, 1]} : vector<16x342xf32> to vector<16x288xf32>
    %c0_4 = arith.constant 0 : index
    %c1 = arith.constant 1 : index
    %7 = vector.load %arg2[%c0_4, %c1] : memref<16x9xf32, #tpu.memory_space<vmem>>, vector<16x1xf32>
    %8 = vector.broadcast %7 : vector<16x1xf32> to vector<16x288xf32>
    %9 = arith.mulf %6, %8 : vector<16x288xf32>
    %10 = arith.addf %5, %9 : vector<16x288xf32>
    %11 = vector.extract_strided_slice %1 {offsets = [0, 2], sizes = [16, 288], strides = [1, 1]} : vector<16x342xf32> to vector<16x288xf32>
    %c0_5 = arith.constant 0 : index
    %c2 = arith.constant 2 : index
    %12 = vector.load %arg2[%c0_5, %c2] : memref<16x9xf32, #tpu.memory_space<vmem>>, vector<16x1xf32>
    %13 = vector.broadcast %12 : vector<16x1xf32> to vector<16x288xf32>
    %14 = arith.mulf %11, %13 : vector<16x288xf32>
    %15 = arith.addf %10, %14 : vector<16x288xf32>
    %16 = vector.extract_strided_slice %1 {offsets = [0, 18], sizes = [16, 288], strides = [1, 1]} : vector<16x342xf32> to vector<16x288xf32>
    %c0_6 = arith.constant 0 : index
    %c3 = arith.constant 3 : index
    %17 = vector.load %arg2[%c0_6, %c3] : memref<16x9xf32, #tpu.memory_space<vmem>>, vector<16x1xf32>
    %18 = vector.broadcast %17 : vector<16x1xf32> to vector<16x288xf32>
    %19 = arith.mulf %16, %18 : vector<16x288xf32>
    %20 = arith.addf %15, %19 : vector<16x288xf32>
    %21 = vector.extract_strided_slice %1 {offsets = [0, 19], sizes = [16, 288], strides = [1, 1]} : vector<16x342xf32> to vector<16x288xf32>
    %c0_7 = arith.constant 0 : index
    %c4 = arith.constant 4 : index
    %22 = vector.load %arg2[%c0_7, %c4] : memref<16x9xf32, #tpu.memory_space<vmem>>, vector<16x1xf32>
    %23 = vector.broadcast %22 : vector<16x1xf32> to vector<16x288xf32>
    %24 = arith.mulf %21, %23 : vector<16x288xf32>
    %25 = arith.addf %20, %24 : vector<16x288xf32>
    %26 = vector.extract_strided_slice %1 {offsets = [0, 20], sizes = [16, 288], strides = [1, 1]} : vector<16x342xf32> to vector<16x288xf32>
    %c0_8 = arith.constant 0 : index
    %c5 = arith.constant 5 : index
    %27 = vector.load %arg2[%c0_8, %c5] : memref<16x9xf32, #tpu.memory_space<vmem>>, vector<16x1xf32>
    %28 = vector.broadcast %27 : vector<16x1xf32> to vector<16x288xf32>
    %29 = arith.mulf %26, %28 : vector<16x288xf32>
    %30 = arith.addf %25, %29 : vector<16x288xf32>
    %31 = vector.extract_strided_slice %1 {offsets = [0, 36], sizes = [16, 288], strides = [1, 1]} : vector<16x342xf32> to vector<16x288xf32>
    %c0_9 = arith.constant 0 : index
    %c6 = arith.constant 6 : index
    %32 = vector.load %arg2[%c0_9, %c6] : memref<16x9xf32, #tpu.memory_space<vmem>>, vector<16x1xf32>
    %33 = vector.broadcast %32 : vector<16x1xf32> to vector<16x288xf32>
    %34 = arith.mulf %31, %33 : vector<16x288xf32>
    %35 = arith.addf %30, %34 : vector<16x288xf32>
    %36 = vector.extract_strided_slice %1 {offsets = [0, 37], sizes = [16, 288], strides = [1, 1]} : vector<16x342xf32> to vector<16x288xf32>
    %c0_10 = arith.constant 0 : index
    %c7 = arith.constant 7 : index
    %37 = vector.load %arg2[%c0_10, %c7] : memref<16x9xf32, #tpu.memory_space<vmem>>, vector<16x1xf32>
    %38 = vector.broadcast %37 : vector<16x1xf32> to vector<16x288xf32>
    %39 = arith.mulf %36, %38 : vector<16x288xf32>
    %40 = arith.addf %35, %39 : vector<16x288xf32>
    %41 = vector.extract_strided_slice %1 {offsets = [0, 38], sizes = [16, 288], strides = [1, 1]} : vector<16x342xf32> to vector<16x288xf32>
    %c0_11 = arith.constant 0 : index
    %c8 = arith.constant 8 : index
    %42 = vector.load %arg2[%c0_11, %c8] : memref<16x9xf32, #tpu.memory_space<vmem>>, vector<16x1xf32>
    %43 = vector.broadcast %42 : vector<16x1xf32> to vector<16x288xf32>
    %44 = arith.mulf %41, %43 : vector<16x288xf32>
    %45 = arith.addf %40, %44 : vector<16x288xf32>
    %c0_12 = arith.constant 0 : index
    %c0_13 = arith.constant 0 : index
    %46 = vector.load %arg3[%c0_12, %c0_13] : memref<16x16xf32, #tpu.memory_space<vmem>>, vector<16x16xf32>
    %cst = arith.constant dense<0.000000e+00> : vector<16x288xf32>
    %47 = tpu.matmul %46, %45, %cst {dimension_numbers = #tpu.dot_dimension_numbers<[1], [0], [0], [1], [0, 0, 1, 1], [], []>} : vector<16x16xf32>, vector<16x288xf32>, vector<16x288xf32> -> vector<16x288xf32>
    %c0_14 = arith.constant 0 : index
    %c0_15 = arith.constant 0 : index
    %48 = vector.load %arg4[%c0_14, %c0_15] : memref<16x1xf32, #tpu.memory_space<vmem>>, vector<16x1xf32>
    %49 = vector.broadcast %48 : vector<16x1xf32> to vector<16x288xf32>
    %50 = arith.mulf %47, %49 : vector<16x288xf32>
    %c0_16 = arith.constant 0 : index
    %c0_17 = arith.constant 0 : index
    %51 = vector.load %arg5[%c0_16, %c0_17] : memref<16x1xf32, #tpu.memory_space<vmem>>, vector<16x1xf32>
    %52 = vector.broadcast %51 : vector<16x1xf32> to vector<16x288xf32>
    %53 = arith.addf %50, %52 : vector<16x288xf32>
    %c0_18 = arith.constant 0 : index
    %c0_19 = arith.constant 0 : index
    %c0_20 = arith.constant 0 : index
    %54 = vector.load %arg6[%c0_18, %c0_19, %c0_20] : memref<1x16x288xf32, #tpu.memory_space<vmem>>, vector<1x16x288xf32>
    %55 = vector.shape_cast %54 : vector<1x16x288xf32> to vector<16x288xf32>
    %56 = vector.shape_cast %53 : vector<16x288xf32> to vector<1x16x288xf32>
    tpu.vector_store %arg6[%c0_18, %c0_19, %c0_20], %56 {strides = array<i32>} : memref<1x16x288xf32, #tpu.memory_space<vmem>>, vector<1x16x288xf32>,
    return
  }
  func.func @transform_0(%arg0: i32) -> (i32, i32, i32) {
    %c0_i32 = arith.constant 0 : i32
    %c0_i32_0 = arith.constant 0 : i32
    %c0_i32_1 = arith.constant 0 : i32
    return %arg0, %c0_i32, %c0_i32_0 : i32, i32, i32
  }
  func.func @transform_1(%arg0: i32) -> (i32, i32) {
    %c0_i32 = arith.constant 0 : i32
    %c0_i32_0 = arith.constant 0 : i32
    %c0_i32_1 = arith.constant 0 : i32
    return %c0_i32, %c0_i32_0 : i32, i32
  }
  func.func @transform_2(%arg0: i32) -> (i32, i32) {
    %c0_i32 = arith.constant 0 : i32
    %c0_i32_0 = arith.constant 0 : i32
    %c0_i32_1 = arith.constant 0 : i32
    return %c0_i32, %c0_i32_0 : i32, i32
  }
  func.func @transform_3(%arg0: i32) -> (i32, i32) {
    %c0_i32 = arith.constant 0 : i32
    %c0_i32_0 = arith.constant 0 : i32
    %c0_i32_1 = arith.constant 0 : i32
    return %c0_i32, %c0_i32_0 : i32, i32
  }
  func.func @transform_4(%arg0: i32) -> (i32, i32) {
    %c0_i32 = arith.constant 0 : i32
    %c0_i32_0 = arith.constant 0 : i32
    %c0_i32_1 = arith.constant 0 : i32
    return %c0_i32, %c0_i32_0 : i32, i32
  }
  func.func @transform_5(%arg0: i32) -> (i32, i32, i32) {
    %c0_i32 = arith.constant 0 : i32
    %c0_i32_0 = arith.constant 0 : i32
    %c0_i32_1 = arith.constant 0 : i32
    return %arg0, %c0_i32, %c0_i32_0 : i32, i32, i32
  }
}

</mosaic_0001>

<llo_original>
// kernel: tpu_custom_call.1
$region0: #{tpu_custom_call.1}
  #allocation0 [shape = 'u32[]', space=smem, size = 0x4, offset = 0x4, fixed_abs, tag = 'smem constant byte address 0x4 - core index']
  #allocation1 [shape = 'u32[144,128]{1,0:T(1,128)}', space=vmem, size = 0x12000, scoped, tag = 'internal scratch']
  %s0 = inlined_call_operand.hbm [shape: f32[2,16,342], index: 0, kind: input, shape index: {}]
  %s1 = inlined_call_operand.vmem [shape: f32[16,9], index: 1, kind: input, shape index: {}]
  %s2 = inlined_call_operand.vmem [shape: f32[16,16], index: 2, kind: input, shape index: {}]
  %s3 = inlined_call_operand.vmem [shape: f32[16,1], index: 3, kind: input, shape index: {}]
  %s4 = inlined_call_operand.vmem [shape: f32[16,1], index: 4, kind: input, shape index: {}]
  %s5 = inlined_call_operand.hbm [shape: f32[2,16,288], index: 5, kind: output, shape index: {}]
  %s6 = sld [smem:[#allocation0]]
  $region57: #{tpu_custom_call.1} parent=0
    _
  %s8 = ssub.s32 1, %s6
  %s9 = scalar_select 0, %s8, %s6
  $region1: #{tpu_custom_call.1} parent=0
    #allocation2 [shape = 'u8[49152]{0}', space=vmem, size = 0xc000, scoped, tag = 'input window, operand 0']
    #allocation3 [shape = 's32[2]{0}', space=sflag, size = 0x8, scoped, tag = 'scoped memory for tpu_custom_call.1']
    #allocation4 [shape = 's32[2]{0}', space=sflag, size = 0x8, scoped, tag = 'scoped memory for tpu_custom_call.1']
    #allocation5 [shape = 'u8[49152]{0}', space=vmem, size = 0xc000, scoped, tag = 'output window, operand 0']
    %10 = vsyncpa [#allocation3], 0
    %s11 = scalar_lea.sflag [#allocation3], 1
    %12 = vsyncpa %s11, 0
    %13 = vsyncpa [#allocation4], 0
    %s14 = scalar_lea.sflag [#allocation4], 1
    %15 = vsyncpa %s14, 0
    loop: start=0, step=1, limit=4
    $region2: #{tpu_custom_call.1} parent=1 // loop_pre_header
      _
    $region3: #{tpu_custom_call.1} parent=1 // loop_header
      %s17 = sphi 0, %s21
      %p18 = scmp.ge.s32.totalorder %s17, 4
      %s27 = sphi 0, %s29
      %s30 = sphi 0, %s27
      %s31 = sphi 0, %s30
      %s47 = sphi 0, %s31
      %s51 = sphi 0, %s51
      %s53 = sphi 0, %s51
      %s54 = sphi 0, %s53
      %s68 = sphi 0, %s54
      %s72 = sphi 0, %s72
      %s74 = sphi 0, %s72
      %s75 = sphi 0, %s74
      %s89 = sphi 0, %s75
      %s93 = sphi 0, %s93
      %s95 = sphi 0, %s93
      %s96 = sphi 0, %s95
      %s110 = sphi 0, %s96
      %s114 = sphi 0, %s114
      %s116 = sphi 0, %s114
      %s117 = sphi 0, %s116
      %s131 = sphi 0, %s117
      %s137 = sphi 0, %s139
      %s140 = sphi 0, %s137
      %s141 = sphi 0, %s140
      %s157 = sphi 0, %s141
    $region4: #{tpu_custom_call.1} parent=1 // loop_header_branch
      %20 = sbr.rel (%p18) target = $region8
    $region5: #{tpu_custom_call.1} parent=1 // loop_body
      %s22 = ssub.s32 %s17, 1
      %s23 = ssub.s32 %s17, 2
      %s24 = sadd.s32 %s17, 1
      %s25 = ssub.s32 %s17, %s24
      %p26 = scmp.eq.s32.totalorder %s25, 0
      %s28 = sadd.s32 %s27, 1
      %s29 = scalar_select %p26, %s27, %s28
      %p32 = pneg %p26
      %p33 = scmp.eq.s32.totalorder %s17, 1
      %p34 = por %p32, %p33
      %p35 = scmp.ne.s32.totalorder %s27, %s30
      %p36 = scmp.eq.s32.totalorder %s17, 0
      %p37 = por %p35, %p36
      %p38 = scmp.ne.s32.totalorder %s27, %s30
      %p39 = scmp.eq.s32.totalorder %s22, 1
      %p40 = por %p38, %p39
      %p41 = scmp.ne.s32.totalorder %s30, %s31
      %p42 = scmp.eq.s32.totalorder %s22, 0
      %p43 = por %p41, %p42
      %p44 = scmp.ne.s32.totalorder %s30, %s31
      %p45 = scmp.eq.s32.totalorder %s23, 1
      %p46 = por %p44, %p45
      %p48 = scmp.ne.s32.totalorder %s31, %s47
      %p49 = scmp.eq.s32.totalorder %s23, 0
      %p50 = por %p48, %p49
      %s52 = sadd.s32 %s51, 1
      %p55 = scmp.eq.s32.totalorder %s17, 1
      %p56 = scmp.ne.s32.totalorder %s51, %s53
      %p57 = scmp.eq.s32.totalorder %s17, 0
      %p58 = por %p56, %p57
      %p59 = scmp.ne.s32.totalorder %s51, %s53
      %p60 = scmp.eq.s32.totalorder %s22, 1
      %p61 = por %p59, %p60
      %p62 = scmp.ne.s32.totalorder %s53, %s54
      %p63 = scmp.eq.s32.totalorder %s22, 0
      %p64 = por %p62, %p63
      %p65 = scmp.ne.s32.totalorder %s53, %s54
      %p66 = scmp.eq.s32.totalorder %s23, 1
      %p67 = por %p65, %p66
      %p69 = scmp.ne.s32.totalorder %s54, %s68
      %p70 = scmp.eq.s32.totalorder %s23, 0
      %p71 = por %p69, %p70
      %s73 = sadd.s32 %s72, 1
      %p76 = scmp.eq.s32.totalorder %s17, 1
      %p77 = scmp.ne.s32.totalorder %s72, %s74
      %p78 = scmp.eq.s32.totalorder %s17, 0
      %p79 = por %p77, %p78
      %p80 = scmp.ne.s32.totalorder %s72, %s74
      %p81 = scmp.eq.s32.totalorder %s22, 1
      %p82 = por %p80, %p81
      %p83 = scmp.ne.s32.totalorder %s74, %s75
      %p84 = scmp.eq.s32.totalorder %s22, 0
      %p85 = por %p83, %p84
      %p86 = scmp.ne.s32.totalorder %s74, %s75
      %p87 = scmp.eq.s32.totalorder %s23, 1
      %p88 = por %p86, %p87
      %p90 = scmp.ne.s32.totalorder %s75, %s89
      %p91 = scmp.eq.s32.totalorder %s23, 0
      %p92 = por %p90, %p91
      %s94 = sadd.s32 %s93, 1
      %p97 = scmp.eq.s32.totalorder %s17, 1
      %p98 = scmp.ne.s32.totalorder %s93, %s95
      %p99 = scmp.eq.s32.totalorder %s17, 0
      %p100 = por %p98, %p99
      %p101 = scmp.ne.s32.totalorder %s93, %s95
      %p102 = scmp.eq.s32.totalorder %s22, 1
      %p103 = por %p101, %p102
      %p104 = scmp.ne.s32.totalorder %s95, %s96
      %p105 = scmp.eq.s32.totalorder %s22, 0
      %p106 = por %p104, %p105
      %p107 = scmp.ne.s32.totalorder %s95, %s96
      %p108 = scmp.eq.s32.totalorder %s23, 1
      %p109 = por %p107, %p108
      %p111 = scmp.ne.s32.totalorder %s96, %s110
      %p112 = scmp.eq.s32.totalorder %s23, 0
      %p113 = por %p111, %p112
      %s115 = sadd.s32 %s114, 1
      %p118 = scmp.eq.s32.totalorder %s17, 1
      %p119 = scmp.ne.s32.totalorder %s114, %s116
      %p120 = scmp.eq.s32.totalorder %s17, 0
      %p121 = por %p119, %p120
      %p122 = scmp.ne.s32.totalorder %s114, %s116
      %p123 = scmp.eq.s32.totalorder %s22, 1
      %p124 = por %p122, %p123
      %p125 = scmp.ne.s32.totalorder %s116, %s117
      %p126 = scmp.eq.s32.totalorder %s22, 0
      %p127 = por %p125, %p126
      %p128 = scmp.ne.s32.totalorder %s116, %s117
      %p129 = scmp.eq.s32.totalorder %s23, 1
      %p130 = por %p128, %p129
      %p132 = scmp.ne.s32.totalorder %s117, %s131
      %p133 = scmp.eq.s32.totalorder %s23, 0
      %p134 = por %p132, %p133
      %s135 = ssub.s32 %s17, %s24
      %p136 = scmp.eq.s32.totalorder %s135, 0
      %s138 = sadd.s32 %s137, 1
      %s139 = scalar_select %p136, %s137, %s138
      %p142 = pneg %p136
      %p143 = scmp.eq.s32.totalorder %s17, 1
      %p144 = por %p142, %p143
      %p145 = scmp.ne.s32.totalorder %s137, %s140
      %p146 = scmp.eq.s32.totalorder %s17, 0
      %p147 = por %p145, %p146
      %p148 = scmp.ne.s32.totalorder %s137, %s140
      %p149 = scmp.eq.s32.totalorder %s22, 1
      %p150 = por %p148, %p149
      %p151 = scmp.ne.s32.totalorder %s140, %s141
      %p152 = scmp.eq.s32.totalorder %s22, 0
      %p153 = por %p151, %p152
      %p154 = scmp.ne.s32.totalorder %s140, %s141
      %p155 = scmp.eq.s32.totalorder %s23, 1
      %p156 = por %p154, %p155
      %p158 = scmp.ne.s32.totalorder %s141, %s157
      %p159 = scmp.eq.s32.totalorder %s23, 0
      %p160 = por %p158, %p159
      %p161 = scmp.le.s32.totalorder 1, %s17
      %p162 = scmp.lt.s32.totalorder %s17, 3
      %p163 = pnand %p161, %p162
      %p164 = pneg %p163
      // Predicated region
      $region9: #{tpu_custom_call.1} parent=5 // pred_check
        _
      $region10: #{tpu_custom_call.1} parent=5 // pred_check_branch
        %166 = sbr.rel (%p163) target = $region12
      $region11: #{tpu_custom_call.1} parent=5 // pred_region
        %s167 = ssub.s32 %s17, 1
        // Predicated region
        $region13: #{tpu_custom_call.1} parent=11 // pred_check
          %p168 = pneg %p64
        $region14: #{tpu_custom_call.1} parent=11 // pred_check_branch
          %170 = sbr.rel (%p168) target = $region16
        $region15: #{tpu_custom_call.1} parent=11 // pred_region
          _
        $region16: #{tpu_custom_call.1} parent=11 // pred_fallthru
          _
        // Predicated region
        $region17: #{tpu_custom_call.1} parent=11 // pred_check
          %p171 = pneg %p85
        $region18: #{tpu_custom_call.1} parent=11 // pred_check_branch
          %173 = sbr.rel (%p171) target = $region20
        $region19: #{tpu_custom_call.1} parent=11 // pred_region
          _
        $region20: #{tpu_custom_call.1} parent=11 // pred_fallthru
          _
        // Predicated region
        $region21: #{tpu_custom_call.1} parent=11 // pred_check
          %p174 = pneg %p106
        $region22: #{tpu_custom_call.1} parent=11 // pred_check_branch
          %176 = sbr.rel (%p174) target = $region24
        $region23: #{tpu_custom_call.1} parent=11 // pred_region
          _
        $region24: #{tpu_custom_call.1} parent=11 // pred_fallthru
          _
        // Predicated region
        $region25: #{tpu_custom_call.1} parent=11 // pred_check
          %p177 = pneg %p127
        $region26: #{tpu_custom_call.1} parent=11 // pred_check_branch
          %179 = sbr.rel (%p177) target = $region28
        $region27: #{tpu_custom_call.1} parent=11 // pred_region
          _
        $region28: #{tpu_custom_call.1} parent=11 // pred_fallthru
          _
      $region12: #{tpu_custom_call.1} parent=5 // pred_fallthru
        _
      %p180 = scmp.lt.s32.totalorder %s17, 2
      // Predicated region
      $region29: #{tpu_custom_call.1} parent=5 // pred_check
        %p181 = pneg %p180
      $region30: #{tpu_custom_call.1} parent=5 // pred_check_branch
        %183 = sbr.rel (%p181) target = $region32
      $region31: #{tpu_custom_call.1} parent=5 // pred_region
        // Predicated region
        $region33: #{tpu_custom_call.1} parent=31 // pred_check
          %p184 = pneg %p37
        $region34: #{tpu_custom_call.1} parent=31 // pred_check_branch
          %186 = sbr.rel (%p184) target = $region36
        $region35: #{tpu_custom_call.1} parent=31 // pred_region
          %s187 = sand.u32 %s27, 1
          %s188 = scalar_lea.sflag [#allocation3], %s187
          %s189 = sand.u32 %s27, 1
          %s190 = smul.addr %s189, 48
          %s191 = scalar_lea.vmem [#allocation2], %s190
          %s193 = ssub.s32 768, 768
          %194 = vsyncadd %s188, %s193
          %s195 = smul.addr %s17, 6
          %s196 = smul.addr %s195, 128
          %s197 = scalar_lea.hbm %s0, %s196
          %s198 = sshll.u32 %s191, 4
          %s199 = int_to_ptr.vmem [resolvable:$true] %s198
          %204 = dma.hbm_to_vmem [thread:$0]  %s197, 768, %s199, %s188, 384, 384, 24
        $region36: #{tpu_custom_call.1} parent=31 // pred_fallthru
          _
      $region32: #{tpu_custom_call.1} parent=5 // pred_fallthru
        _
      %p205 = scmp.le.s32.totalorder 1, %s17
      %p206 = scmp.lt.s32.totalorder %s17, 3
      %p207 = pnand %p205, %p206
      %p208 = pneg %p207
      // Predicated region
      $region37: #{tpu_custom_call.1} parent=5 // pred_check
        _
      $region38: #{tpu_custom_call.1} parent=5 // pred_check_branch
        %210 = sbr.rel (%p207) target = $region40
      $region39: #{tpu_custom_call.1} parent=5 // pred_region
        %s211 = ssub.s32 %s17, 1
        %s212 = sand.u32 %s30, 1
        %s213 = scalar_lea.sflag [#allocation3], %s212
        %s214 = sand.u32 %s30, 1
        %s215 = smul.addr %s214, 48
        %s216 = scalar_lea.vmem [#allocation2], %s215
        // Predicated region
        $region41: #{tpu_custom_call.1} parent=39 // pred_check
          %p217 = pneg %p43
        $region42: #{tpu_custom_call.1} parent=39 // pred_check_branch
          %219 = sbr.rel (%p217) target = $region44
        $region43: #{tpu_custom_call.1} parent=39 // pred_region
          %220 = dma.done %s213, 768
        $region44: #{tpu_custom_call.1} parent=39 // pred_fallthru
          _
        %s221 = sand.u32 %s30, 1
        %s222 = scalar_lea.sflag [#allocation3], %s221
        %s223 = sand.u32 %s30, 1
        %s224 = smul.addr %s223, 48
        %s225 = scalar_lea.vmem [#allocation2], %s224
        %p226 = pneg %p43
        %p227 = pneg %p40
        %p228 = pneg %p64
        %p229 = pneg %p61
        %p230 = pneg %p85
        %p231 = pneg %p82
        %p232 = pneg %p106
        %p233 = pneg %p103
        %p234 = pneg %p127
        %p235 = pneg %p124
        %p236 = pneg %p153
        %p237 = pneg %p150
        %s238 = sand.u32 %s140, 1
        %s239 = scalar_lea.sflag [#allocation4], %s238
        %s240 = sand.u32 %s140, 1
        %s241 = smul.addr %s240, 48
        %s242 = scalar_lea.vmem [#allocation5], %s241
        %v243 = vld [vmem:[%s216] sm:$0xff]
        %v244 = vld [vmem:[%s216 + $0x8] sm:$0xff]
        %v245 = vld [vmem:[%s216 + $0x10] sm:$0xff]
        %v246 = vld [vmem:[%s216 + $0x18] sm:$0xff]
        %v247 = vld [vmem:[%s216 + $0x20] sm:$0xff]
        %v248 = vld [vmem:[%s216 + $0x28] sm:$0xff]
        %v249 = vld [vmem:[%s1] sm:$0xff]
        %v250 = vld [vmem:[%s1 + $0x8] sm:$0xff]
        %252 = vset.pattern.permute.xlu0 0
        %253 = vperm.xlu0 %252, %v249
        %v254 = vpop.permute.xlu0 %253
        %257 = vset.pattern.permute.xlu0 0
        %258 = vperm.xlu0 %257, %v250
        %v259 = vpop.permute.xlu0 %258
        %v261 = vmul.f32 %v243, %v254
        %v262 = vmul.f32 %v244, %v254
        %v263 = vmul.f32 %v245, %v254
        %v264 = vmul.f32 %v246, %v259
        %v265 = vmul.f32 %v247, %v259
        %v266 = vmul.f32 %v248, %v259
        %267 = vset.pattern.permute.xlu0 1
        %268 = vperm.xlu0 %267, %v249
        %v269 = vpop.permute.xlu0 %268
        %271 = vset.pattern.permute.xlu0 1
        %272 = vperm.xlu0 %271, %v250
        %v273 = vpop.permute.xlu0 %272
        %v275 = vmul.f32 %v243, %v269
        %v276 = vmul.f32 %v244, %v269
        %v277 = vmul.f32 %v245, %v269
        %v278 = vmul.f32 %v246, %v273
        %v279 = vmul.f32 %v247, %v273
        %v280 = vmul.f32 %v248, %v273
        %287 = vrot.lane.b32.xlu0 %v275, 127
        %v288 = vpop.permute.xlu0 %287
        %289 = vrot.lane.b32.xlu0 %v276, 127
        %v290 = vpop.permute.xlu0 %289
        %291 = vrot.lane.b32.xlu0 %v277, 127
        %v292 = vpop.permute.xlu0 %291
        %293 = vrot.lane.b32.xlu0 %v278, 127
        %v294 = vpop.permute.xlu0 %293
        %295 = vrot.lane.b32.xlu0 %v279, 127
        %v296 = vpop.permute.xlu0 %295
        %297 = vrot.lane.b32.xlu0 %v280, 127
        %v298 = vpop.permute.xlu0 %297
        %vm299 = vcmask 1039360
        %v300 = vsel %vm299, %v288, %v290
        %v301 = vsel %vm299, %v290, %v292
        %v302 = vsel %vm299, %v294, %v296
        %v303 = vsel %vm299, %v296, %v298
        %v310 = vadd.f32 %v261, %v300
        %v311 = vadd.f32 %v262, %v301
        %v312 = vadd.f32 %v263, %v292
        %v313 = vadd.f32 %v264, %v302
        %v314 = vadd.f32 %v265, %v303
        %v315 = vadd.f32 %v266, %v298
        %316 = vset.pattern.permute.xlu0 2
        %317 = vperm.xlu0 %316, %v249
        %v318 = vpop.permute.xlu0 %317
        %320 = vset.pattern.permute.xlu0 2
        %321 = vperm.xlu0 %320, %v250
        %v322 = vpop.permute.xlu0 %321
        %v324 = vmul.f32 %v243, %v318
        %v325 = vmul.f32 %v244, %v318
        %v326 = vmul.f32 %v245, %v318
        %v327 = vmul.f32 %v246, %v322
        %v328 = vmul.f32 %v247, %v322
        %v329 = vmul.f32 %v248, %v322
        %336 = vrot.lane.b32.xlu0 %v324, 126
        %v337 = vpop.permute.xlu0 %336
        %338 = vrot.lane.b32.xlu0 %v325, 126
        %v339 = vpop.permute.xlu0 %338
        %340 = vrot.lane.b32.xlu0 %v326, 126
        %v341 = vpop.permute.xlu0 %340
        %342 = vrot.lane.b32.xlu0 %v327, 126
        %v343 = vpop.permute.xlu0 %342
        %344 = vrot.lane.b32.xlu0 %v328, 126
        %v345 = vpop.permute.xlu0 %344
        %346 = vrot.lane.b32.xlu0 %v329, 126
        %v347 = vpop.permute.xlu0 %346
        %vm348 = vcmask 1031168
        %v349 = vsel %vm348, %v337, %v339
        %v350 = vsel %vm348, %v339, %v341
        %v351 = vsel %vm348, %v343, %v345
        %v352 = vsel %vm348, %v345, %v347
        %v359 = vadd.f32 %v310, %v349
        %v360 = vadd.f32 %v311, %v350
        %v361 = vadd.f32 %v312, %v341
        %v362 = vadd.f32 %v313, %v351
        %v363 = vadd.f32 %v314, %v352
        %v364 = vadd.f32 %v315, %v347
        %365 = vset.pattern.permute.xlu0 3
        %366 = vperm.xlu0 %365, %v249
        %v367 = vpop.permute.xlu0 %366
        %369 = vset.pattern.permute.xlu0 3
        %370 = vperm.xlu0 %369, %v250
        %v371 = vpop.permute.xlu0 %370
        %v373 = vmul.f32 %v243, %v367
        %v374 = vmul.f32 %v244, %v367
        %v375 = vmul.f32 %v245, %v367
        %v376 = vmul.f32 %v246, %v371
        %v377 = vmul.f32 %v247, %v371
        %v378 = vmul.f32 %v248, %v371
        %385 = vrot.lane.b32.xlu0 %v373, 110
        %v386 = vpop.permute.xlu0 %385
        %387 = vrot.lane.b32.xlu0 %v374, 110
        %v388 = vpop.permute.xlu0 %387
        %389 = vrot.lane.b32.xlu0 %v375, 110
        %v390 = vpop.permute.xlu0 %389
        %391 = vrot.lane.b32.xlu0 %v376, 110
        %v392 = vpop.permute.xlu0 %391
        %393 = vrot.lane.b32.xlu0 %v377, 110
        %v394 = vpop.permute.xlu0 %393
        %395 = vrot.lane.b32.xlu0 %v378, 110
        %v396 = vpop.permute.xlu0 %395
        %vm397 = vcmask 900096
        %v398 = vsel %vm397, %v386, %v388
        %v399 = vsel %vm397, %v388, %v390
        %v400 = vsel %vm397, %v392, %v394
        %v401 = vsel %vm397, %v394, %v396
        %v408 = vadd.f32 %v359, %v398
        %v409 = vadd.f32 %v360, %v399
        %v410 = vadd.f32 %v361, %v390
        %v411 = vadd.f32 %v362, %v400
        %v412 = vadd.f32 %v363, %v401
        %v413 = vadd.f32 %v364, %v396
        %414 = vset.pattern.permute.xlu0 4
        %415 = vperm.xlu0 %414, %v249
        %v416 = vpop.permute.xlu0 %415
        %418 = vset.pattern.permute.xlu0 4
        %419 = vperm.xlu0 %418, %v250
        %v420 = vpop.permute.xlu0 %419
        %v422 = vmul.f32 %v243, %v416
        %v423 = vmul.f32 %v244, %v416
        %v424 = vmul.f32 %v245, %v416
        %v425 = vmul.f32 %v246, %v420
        %v426 = vmul.f32 %v247, %v420
        %v427 = vmul.f32 %v248, %v420
        %434 = vrot.lane.b32.xlu0 %v422, 109
        %v435 = vpop.permute.xlu0 %434
        %436 = vrot.lane.b32.xlu0 %v423, 109
        %v437 = vpop.permute.xlu0 %436
        %438 = vrot.lane.b32.xlu0 %v424, 109
        %v439 = vpop.permute.xlu0 %438
        %440 = vrot.lane.b32.xlu0 %v425, 109
        %v441 = vpop.permute.xlu0 %440
        %442 = vrot.lane.b32.xlu0 %v426, 109
        %v443 = vpop.permute.xlu0 %442
        %444 = vrot.lane.b32.xlu0 %v427, 109
        %v445 = vpop.permute.xlu0 %444
        %vm446 = vcmask 891904
        %v447 = vsel %vm446, %v435, %v437
        %v448 = vsel %vm446, %v437, %v439
        %v449 = vsel %vm446, %v441, %v443
        %v450 = vsel %vm446, %v443, %v445
        %v457 = vadd.f32 %v408, %v447
        %v458 = vadd.f32 %v409, %v448
        %v459 = vadd.f32 %v410, %v439
        %v460 = vadd.f32 %v411, %v449
        %v461 = vadd.f32 %v412, %v450
        %v462 = vadd.f32 %v413, %v445
        %463 = vset.pattern.permute.xlu0 5
        %464 = vperm.xlu0 %463, %v249
        %v465 = vpop.permute.xlu0 %464
        %467 = vset.pattern.permute.xlu0 5
        %468 = vperm.xlu0 %467, %v250
        %v469 = vpop.permute.xlu0 %468
        %v471 = vmul.f32 %v243, %v465
        %v472 = vmul.f32 %v244, %v465
        %v473 = vmul.f32 %v245, %v465
        %v474 = vmul.f32 %v246, %v469
        %v475 = vmul.f32 %v247, %v469
        %v476 = vmul.f32 %v248, %v469
        %483 = vrot.lane.b32.xlu0 %v471, 108
        %v484 = vpop.permute.xlu0 %483
        %485 = vrot.lane.b32.xlu0 %v472, 108
        %v486 = vpop.permute.xlu0 %485
        %487 = vrot.lane.b32.xlu0 %v473, 108
        %v488 = vpop.permute.xlu0 %487
        %489 = vrot.lane.b32.xlu0 %v474, 108
        %v490 = vpop.permute.xlu0 %489
        %491 = vrot.lane.b32.xlu0 %v475, 108
        %v492 = vpop.permute.xlu0 %491
        %493 = vrot.lane.b32.xlu0 %v476, 108
        %v494 = vpop.permute.xlu0 %493
        %vm495 = vcmask 883712
        %v496 = vsel %vm495, %v484, %v486
        %v497 = vsel %vm495, %v486, %v488
        %v498 = vsel %vm495, %v490, %v492
        %v499 = vsel %vm495, %v492, %v494
        %v506 = vadd.f32 %v457, %v496
        %v507 = vadd.f32 %v458, %v497
        %v508 = vadd.f32 %v459, %v488
        %v509 = vadd.f32 %v460, %v498
        %v510 = vadd.f32 %v461, %v499
        %v511 = vadd.f32 %v462, %v494
        %512 = vset.pattern.permute.xlu0 6
        %513 = vperm.xlu0 %512, %v249
        %v514 = vpop.permute.xlu0 %513
        %516 = vset.pattern.permute.xlu0 6
        %517 = vperm.xlu0 %516, %v250
        %v518 = vpop.permute.xlu0 %517
        %v520 = vmul.f32 %v243, %v514
        %v521 = vmul.f32 %v244, %v514
        %v522 = vmul.f32 %v245, %v514
        %v523 = vmul.f32 %v246, %v518
        %v524 = vmul.f32 %v247, %v518
        %v525 = vmul.f32 %v248, %v518
        %532 = vrot.lane.b32.xlu0 %v520, 92
        %v533 = vpop.permute.xlu0 %532
        %534 = vrot.lane.b32.xlu0 %v521, 92
        %v535 = vpop.permute.xlu0 %534
        %536 = vrot.lane.b32.xlu0 %v522, 92
        %v537 = vpop.permute.xlu0 %536
        %538 = vrot.lane.b32.xlu0 %v523, 92
        %v539 = vpop.permute.xlu0 %538
        %540 = vrot.lane.b32.xlu0 %v524, 92
        %v541 = vpop.permute.xlu0 %540
        %542 = vrot.lane.b32.xlu0 %v525, 92
        %v543 = vpop.permute.xlu0 %542
        %vm544 = vcmask 752640
        %v545 = vsel %vm544, %v533, %v535
        %v546 = vsel %vm544, %v535, %v537
        %v547 = vsel %vm544, %v539, %v541
        %v548 = vsel %vm544, %v541, %v543
        %v555 = vadd.f32 %v506, %v545
        %v556 = vadd.f32 %v507, %v546
        %v557 = vadd.f32 %v508, %v537
        %v558 = vadd.f32 %v509, %v547
        %v559 = vadd.f32 %v510, %v548
        %v560 = vadd.f32 %v511, %v543
        %561 = vset.pattern.permute.xlu0 7
        %562 = vperm.xlu0 %561, %v249
        %v563 = vpop.permute.xlu0 %562
        %565 = vset.pattern.permute.xlu0 7
        %566 = vperm.xlu0 %565, %v250
        %v567 = vpop.permute.xlu0 %566
        %v569 = vmul.f32 %v243, %v563
        %v570 = vmul.f32 %v244, %v563
        %v571 = vmul.f32 %v245, %v563
        %v572 = vmul.f32 %v246, %v567
        %v573 = vmul.f32 %v247, %v567
        %v574 = vmul.f32 %v248, %v567
        %581 = vrot.lane.b32.xlu0 %v569, 91
        %v582 = vpop.permute.xlu0 %581
        %583 = vrot.lane.b32.xlu0 %v570, 91
        %v584 = vpop.permute.xlu0 %583
        %585 = vrot.lane.b32.xlu0 %v571, 91
        %v586 = vpop.permute.xlu0 %585
        %587 = vrot.lane.b32.xlu0 %v572, 91
        %v588 = vpop.permute.xlu0 %587
        %589 = vrot.lane.b32.xlu0 %v573, 91
        %v590 = vpop.permute.xlu0 %589
        %591 = vrot.lane.b32.xlu0 %v574, 91
        %v592 = vpop.permute.xlu0 %591
        %vm593 = vcmask 744448
        %v594 = vsel %vm593, %v582, %v584
        %v595 = vsel %vm593, %v584, %v586
        %v596 = vsel %vm593, %v588, %v590
        %v597 = vsel %vm593, %v590, %v592
        %v604 = vadd.f32 %v555, %v594
        %v605 = vadd.f32 %v556, %v595
        %v606 = vadd.f32 %v557, %v586
        %v607 = vadd.f32 %v558, %v596
        %v608 = vadd.f32 %v559, %v597
        %v609 = vadd.f32 %v560, %v592
        %610 = vset.pattern.permute.xlu0 8
        %611 = vperm.xlu0 %610, %v249
        %v612 = vpop.permute.xlu0 %611
        %614 = vset.pattern.permute.xlu0 8
        %615 = vperm.xlu0 %614, %v250
        %v616 = vpop.permute.xlu0 %615
        %v618 = vmul.f32 %v243, %v612
        %v619 = vmul.f32 %v244, %v612
        %v620 = vmul.f32 %v245, %v612
        %v621 = vmul.f32 %v246, %v616
        %v622 = vmul.f32 %v247, %v616
        %v623 = vmul.f32 %v248, %v616
        %630 = vrot.lane.b32.xlu0 %v618, 90
        %v631 = vpop.permute.xlu0 %630
        %632 = vrot.lane.b32.xlu0 %v619, 90
        %v633 = vpop.permute.xlu0 %632
        %634 = vrot.lane.b32.xlu0 %v620, 90
        %v635 = vpop.permute.xlu0 %634
        %636 = vrot.lane.b32.xlu0 %v621, 90
        %v637 = vpop.permute.xlu0 %636
        %638 = vrot.lane.b32.xlu0 %v622, 90
        %v639 = vpop.permute.xlu0 %638
        %640 = vrot.lane.b32.xlu0 %v623, 90
        %v641 = vpop.permute.xlu0 %640
        %vm642 = vcmask 736256
        %v643 = vsel %vm642, %v631, %v633
        %v644 = vsel %vm642, %v633, %v635
        %v645 = vsel %vm642, %v637, %v639
        %v646 = vsel %vm642, %v639, %v641
        %v653 = vadd.f32 %v604, %v643
        %v654 = vadd.f32 %v605, %v644
        %v655 = vadd.f32 %v606, %v635
        %v656 = vadd.f32 %v607, %v645
        %v657 = vadd.f32 %v608, %v646
        %v658 = vadd.f32 %v609, %v641
        %v659 = vld [vmem:[%s2] sm:$0xff]
        %v660 = vld [vmem:[%s2 + $0x8] sm:$0xff]
        %vm661 = vcmask 130048
        %v663 = vsel %vm661, %v659, 0
        %v666 = vsel %vm661, %v660, 0
        %668 = vmatprep.subr.mxu0 0.0
        %669 = vmatpush1.msra.mxu0 0.0
        %670 = vmatprep.subr.mxu0 0.0
        %671 = vmatpush1.msra.mxu0 0.0
        %672 = vmatprep.subr.mxu0 0.0
        %673 = vmatpush1.msra.mxu0 0.0
        %674 = vmatprep.subr.mxu0 0.0
        %675 = vmatpush1.msra.mxu0 0.0
        %676 = vmatprep.subr.mxu0 0.0
        %677 = vmatpush1.msra.mxu0 0.0
        %678 = vmatprep.subr.mxu0 0.0
        %679 = vmatpush1.msra.mxu0 0.0
        %680 = vmatprep.subr.mxu0 0.0
        %681 = vmatpush1.msra.mxu0 0.0
        %682 = vmatprep.subr.mxu0 0.0
        %683 = vmatpush1.msra.mxu0 0.0
        %684 = vmatprep.subr.mxu0 0.0
        %685 = vmatpush1.msra.mxu0 0.0
        %686 = vmatprep.subr.mxu0 0.0
        %687 = vmatpush1.msra.mxu0 0.0
        %688 = vmatprep.subr.mxu0 0.0
        %689 = vmatpush1.msra.mxu0 0.0
        %690 = vmatprep.subr.mxu0 0.0
        %691 = vmatpush1.msra.mxu0 0.0
        %692 = vmatprep.subr.mxu0 0.0
        %693 = vmatpush1.msra.mxu0 0.0
        %694 = vmatprep.subr.mxu0 0.0
        %695 = vmatpush1.msra.mxu0 0.0
        %696 = vmatprep.subr.mxu0 %v657
        %697 = vmatpush1.msra.mxu0 %v656
        %698 = vmatprep.subr.mxu0 %v654
        %699 = vmatpush1.msra.mxu0 %v653
        %700 = vmatprep.subr.mxu0 0.0
        %701 = vmatpush2.msra.mxu0 0.0
        %702 = vmatprep.subr.mxu0 0.0
        %703 = vmatpush2.msra.mxu0 0.0
        %704 = vmatprep.subr.mxu0 0.0
        %705 = vmatpush2.msra.mxu0 0.0
        %706 = vmatprep.subr.mxu0 0.0
        %707 = vmatpush2.msra.mxu0 0.0
        %708 = vmatprep.subr.mxu0 0.0
        %709 = vmatpush2.msra.mxu0 0.0
        %710 = vmatprep.subr.mxu0 0.0
        %711 = vmatpush2.msra.mxu0 0.0
        %712 = vmatprep.subr.mxu0 0.0
        %713 = vmatpush2.msra.mxu0 0.0
        %714 = vmatprep.subr.mxu0 0.0
        %715 = vmatpush2.msra.mxu0 0.0
        %716 = vmatprep.subr.mxu0 0.0
        %717 = vmatpush2.msra.mxu0 0.0
        %718 = vmatprep.subr.mxu0 0.0
        %719 = vmatpush2.msra.mxu0 0.0
        %720 = vmatprep.subr.mxu0 0.0
        %721 = vmatpush2.msra.mxu0 0.0
        %722 = vmatprep.subr.mxu0 0.0
        %723 = vmatpush2.msra.mxu0 0.0
        %724 = vmatprep.subr.mxu0 0.0
        %725 = vmatpush2.msra.mxu0 0.0
        %726 = vmatprep.subr.mxu0 0.0
        %727 = vmatpush2.msra.mxu0 0.0
        %728 = vmatprep.subr.mxu0 0.0
        %729 = vmatpush2.msra.mxu0 0.0
        %730 = vmatprep.subr.mxu0 0.0
        %731 = vmatpush2.msra.mxu0 0.0
        %732 = vmatprep.mubr.f32.mxu0 0.0
        %733 = vmatmul.mubr.f32.gmra.mxu0 %v663
        %v734 = vpop.f32.mrf.mxu0
        %v735 = vadd.f32 0.0, %v734
        %v736 = vpop.f32.mrf.mxu0
        %v737 = vadd.f32 0.0, %v736
        %738 = vmatprep.mubr.f32.mxu0 0.0
        %739 = vmatmul.mubr.f32.gmra.mxu0 %v666
        %v740 = vpop.f32.mrf.mxu0
        %v741 = vadd.f32 0.0, %v740
        %v742 = vpop.f32.mrf.mxu0
        %v743 = vadd.f32 0.0, %v742
        %744 = vdwg.mxu0
        %745 = vmatprep.subr.mxu0 0.0
        %746 = vmatpush1.msra.mxu0 0.0
        %747 = vmatprep.subr.mxu0 0.0
        %748 = vmatpush1.msra.mxu0 0.0
        %749 = vmatprep.subr.mxu0 0.0
        %750 = vmatpush1.msra.mxu0 0.0
        %751 = vmatprep.subr.mxu0 0.0
        %752 = vmatpush1.msra.mxu0 0.0
        %753 = vmatprep.subr.mxu0 0.0
        %754 = vmatpush1.msra.mxu0 0.0
        %755 = vmatprep.subr.mxu0 0.0
        %756 = vmatpush1.msra.mxu0 0.0
        %757 = vmatprep.subr.mxu0 0.0
        %758 = vmatpush1.msra.mxu0 0.0
        %759 = vmatprep.subr.mxu0 0.0
        %760 = vmatpush1.msra.mxu0 0.0
        %761 = vmatprep.subr.mxu0 0.0
        %762 = vmatpush1.msra.mxu0 0.0
        %763 = vmatprep.subr.mxu0 0.0
        %764 = vmatpush1.msra.mxu0 0.0
        %765 = vmatprep.subr.mxu0 0.0
        %766 = vmatpush1.msra.mxu0 0.0
        %767 = vmatprep.subr.mxu0 0.0
        %768 = vmatpush1.msra.mxu0 0.0
        %769 = vmatprep.subr.mxu0 0.0
        %770 = vmatpush1.msra.mxu0 0.0
        %771 = vmatprep.subr.mxu0 0.0
        %772 = vmatpush1.msra.mxu0 0.0
        %773 = vmatprep.subr.mxu0 0.0
        %774 = vmatpush1.msra.mxu0 %v658
        %775 = vmatprep.subr.mxu0 0.0
        %776 = vmatpush1.msra.mxu0 %v655
        %777 = vmatprep.subr.mxu0 0.0
        %778 = vmatpush2.msra.mxu0 0.0
        %779 = vmatprep.subr.mxu0 0.0
        %780 = vmatpush2.msra.mxu0 0.0
        %781 = vmatprep.subr.mxu0 0.0
        %782 = vmatpush2.msra.mxu0 0.0
        %783 = vmatprep.subr.mxu0 0.0
        %784 = vmatpush2.msra.mxu0 0.0
        %785 = vmatprep.subr.mxu0 0.0
        %786 = vmatpush2.msra.mxu0 0.0
        %787 = vmatprep.subr.mxu0 0.0
        %788 = vmatpush2.msra.mxu0 0.0
        %789 = vmatprep.subr.mxu0 0.0
        %790 = vmatpush2.msra.mxu0 0.0
        %791 = vmatprep.subr.mxu0 0.0
        %792 = vmatpush2.msra.mxu0 0.0
        %793 = vmatprep.subr.mxu0 0.0
        %794 = vmatpush2.msra.mxu0 0.0
        %795 = vmatprep.subr.mxu0 0.0
        %796 = vmatpush2.msra.mxu0 0.0
        %797 = vmatprep.subr.mxu0 0.0
        %798 = vmatpush2.msra.mxu0 0.0
        %799 = vmatprep.subr.mxu0 0.0
        %800 = vmatpush2.msra.mxu0 0.0
        %801 = vmatprep.subr.mxu0 0.0
        %802 = vmatpush2.msra.mxu0 0.0
        %803 = vmatprep.subr.mxu0 0.0
        %804 = vmatpush2.msra.mxu0 0.0
        %805 = vmatprep.subr.mxu0 0.0
        %806 = vmatpush2.msra.mxu0 0.0
        %807 = vmatprep.subr.mxu0 0.0
        %808 = vmatpush2.msra.mxu0 0.0
        %809 = vmatprep.mubr.f32.mxu0 0.0
        %810 = vmatmul.mubr.f32.gmra.mxu0 %v663
        %v811 = vpop.f32.mrf.mxu0
        %v812 = vadd.f32 0.0, %v811
        %v813 = vpop.f32.mrf.mxu0
        %814 = vmatprep.mubr.f32.mxu0 0.0
        %815 = vmatmul.mubr.f32.gmra.mxu0 %v666
        %v816 = vpop.f32.mrf.mxu0
        %v817 = vadd.f32 0.0, %v816
        %v818 = vpop.f32.mrf.mxu0
        %819 = vdwg.mxu0
        %v820 = vld [vmem:[%s3] sm:$0xff]
        %v821 = vld [vmem:[%s3 + $0x8] sm:$0xff]
        %823 = vset.pattern.permute.xlu0 0
        %824 = vperm.xlu0 %823, %v820
        %v825 = vpop.permute.xlu0 %824
        %828 = vset.pattern.permute.xlu0 0
        %829 = vperm.xlu0 %828, %v821
        %v830 = vpop.permute.xlu0 %829
        %v832 = vmul.f32 %v735, %v825
        %v833 = vmul.f32 %v737, %v825
        %v834 = vmul.f32 %v812, %v825
        %v835 = vmul.f32 %v741, %v830
        %v836 = vmul.f32 %v743, %v830
        %v837 = vmul.f32 %v817, %v830
        %v838 = vld [vmem:[%s4] sm:$0xff]
        %v839 = vld [vmem:[%s4 + $0x8] sm:$0xff]
        %841 = vset.pattern.permute.xlu0 0
        %842 = vperm.xlu0 %841, %v838
        %v843 = vpop.permute.xlu0 %842
        %846 = vset.pattern.permute.xlu0 0
        %847 = vperm.xlu0 %846, %v839
        %v848 = vpop.permute.xlu0 %847
        %v850 = vadd.f32 %v832, %v843
        %v851 = vadd.f32 %v833, %v843
        %v852 = vadd.f32 %v834, %v843
        %v853 = vadd.f32 %v835, %v848
        %v854 = vadd.f32 %v836, %v848
        %v855 = vadd.f32 %v837, %v848
        %856 = vst [vmem:[%s242] sm:$0xff] %v850
        %857 = vst [vmem:[%s242 + $0x8] sm:$0xff] %v851
        %vm858 = vcmask 261120
        %859 = vst.msk [vmem:[%s242 + $0x10] sm:$0xff] %vm858, %v852
        %860 = vst [vmem:[%s242 + $0x18] sm:$0xff] %v853
        %861 = vst [vmem:[%s242 + $0x20] sm:$0xff] %v854
        %862 = vst.msk [vmem:[%s242 + $0x28] sm:$0xff] %vm858, %v855
        %s863 = sand.u32 %s140, 1
        %s864 = scalar_lea.sflag [#allocation4], %s863
        %s865 = sand.u32 %s140, 1
        %s866 = smul.addr %s865, 48
        %s867 = scalar_lea.vmem [#allocation5], %s866
        // Predicated region
        $region45: #{tpu_custom_call.1} parent=39 // pred_check
          %p868 = pneg %p150
        $region46: #{tpu_custom_call.1} parent=39 // pred_check_branch
          %870 = sbr.rel (%p868) target = $region48
        $region47: #{tpu_custom_call.1} parent=39 // pred_region
          %s872 = ssub.s32 768, 768
          %873 = vsyncadd %s864, %s872
          %s874 = smul.addr %s22, 6
          %s875 = smul.addr %s874, 128
          %s876 = scalar_lea.hbm %s5, %s875
          %s877 = sshll.u32 %s867, 4
          %s878 = int_to_ptr.vmem [resolvable:$true] %s877
          %883 = dma.vmem_to_hbm [thread:$0]  %s878, 768, %s876, %s864, 384, 384, 24
        $region48: #{tpu_custom_call.1} parent=39 // pred_fallthru
          _
      $region40: #{tpu_custom_call.1} parent=5 // pred_fallthru
        _
      %p884 = scmp.le.s32.totalorder 2, %s17
      // Predicated region
      $region49: #{tpu_custom_call.1} parent=5 // pred_check
        %p885 = pneg %p884
      $region50: #{tpu_custom_call.1} parent=5 // pred_check_branch
        %887 = sbr.rel (%p885) target = $region52
      $region51: #{tpu_custom_call.1} parent=5 // pred_region
        %s888 = ssub.s32 %s17, 2
        // Predicated region
        $region53: #{tpu_custom_call.1} parent=51 // pred_check
          %p889 = pneg %p156
        $region54: #{tpu_custom_call.1} parent=51 // pred_check_branch
          %891 = sbr.rel (%p889) target = $region56
        $region55: #{tpu_custom_call.1} parent=51 // pred_region
          %s892 = sand.u32 %s141, 1
          %s893 = scalar_lea.sflag [#allocation4], %s892
          %s894 = sand.u32 %s141, 1
          %s895 = smul.addr %s894, 48
          %s896 = scalar_lea.vmem [#allocation5], %s895
          %897 = dma.done %s893, 768
        $region56: #{tpu_custom_call.1} parent=51 // pred_fallthru
          _
      $region52: #{tpu_custom_call.1} parent=5 // pred_fallthru
        _
    $region6: #{tpu_custom_call.1} parent=1 // loop_footer
      %s21 = sadd.s32 1, %s17
    $region7: #{tpu_custom_call.1} parent=1 // loop_footer_branch
      %16 = sbr.rel target = $region3
    $region8: #{tpu_custom_call.1} parent=1 // loop_exit
      _
    %898 = vsyncpa [#allocation3], 1
    %s899 = scalar_lea.sflag [#allocation3], 1
    %900 = vsyncpa %s899, 1
    %901 = vsyncpa [#allocation4], 1
    %s902 = scalar_lea.sflag [#allocation4], 1
    %903 = vsyncpa %s902, 1

</llo_original>
